<compile_context>
chip_gen: v6e
topology: v6e:2x2x1
jax: 0.10.0
libtpu: 0.0.40
codegen_flags: <defaults>
</compile_context>

<pallas_src>
import functools

import jax
import jax.numpy as jnp
from jax import lax
from jax.experimental import pallas as pl
from jax.experimental.pallas import tpu as pltpu

VMEM_LIMIT_BYTES = 32 * 1024 * 1024
LN_EPS = 1e-5  # PyTorch LayerNorm default


def _cparams(*dimension_semantics):
    return pltpu.CompilerParams(
        dimension_semantics=dimension_semantics,
        vmem_limit_bytes=VMEM_LIMIT_BYTES)


def _pick_row_tile(m, cap=512):
    """Largest row tile <= cap that divides m and is a multiple of 8."""
    for t in range(min(cap, m), 7, -1):
        if m % t == 0 and t % 8 == 0:
            return t
    return m


def _layernorm(x, gamma, beta):
    mean = jnp.mean(x, axis=-1, keepdims=True)
    var = jnp.mean((x - mean) ** 2, axis=-1, keepdims=True)
    return (x - mean) * lax.rsqrt(var + LN_EPS) * gamma + beta


# --------------------------------------------------------------------------- #
# Row-tiled matmul / LayerNorm kernels                                        #
# --------------------------------------------------------------------------- #
def _matmul_kernel(x_ref, w_ref, o_ref):
    o_ref[...] = jnp.dot(x_ref[...].astype(jnp.bfloat16), w_ref[...],
                         preferred_element_type=jnp.float32)


def pallas_matmul(x, w_bf16):
    m, k = x.shape
    n = w_bf16.shape[1]
    tm = _pick_row_tile(m)
    return pl.pallas_call(
        _matmul_kernel,
        grid=(m // tm,),
        in_specs=[pl.BlockSpec((tm, k), lambda i: (i, 0)),
                  pl.BlockSpec((k, n), lambda i: (0, 0))],
        out_specs=pl.BlockSpec((tm, n), lambda i: (i, 0)),
        out_shape=jax.ShapeDtypeStruct((m, n), jnp.float32),
        compiler_params=_cparams("parallel"),
    )(x, w_bf16)


def _ln_kernel(x_ref, g_ref, b_ref, o_ref):
    o_ref[...] = _layernorm(x_ref[...], g_ref[...], b_ref[...])


def pallas_layernorm(x, gamma, beta):
    m, f = x.shape
    tm = _pick_row_tile(m)
    return pl.pallas_call(
        _ln_kernel,
        grid=(m // tm,),
        in_specs=[pl.BlockSpec((tm, f), lambda i: (i, 0)),
                  pl.BlockSpec((1, f), lambda i: (0, 0)),
                  pl.BlockSpec((1, f), lambda i: (0, 0))],
        out_specs=pl.BlockSpec((tm, f), lambda i: (i, 0)),
        out_shape=jax.ShapeDtypeStruct((m, f), jnp.float32),
        compiler_params=_cparams("parallel"),
    )(x, gamma.reshape(1, f), beta.reshape(1, f))


def _ln_relu_add_kernel(x_ref, r_ref, g_ref, b_ref, o_ref):
    y = _layernorm(x_ref[...], g_ref[...], b_ref[...])
    o_ref[...] = jax.nn.relu(y) + r_ref[...]


def pallas_ln_relu_add(x, res, gamma, beta):
    m, f = x.shape
    tm = _pick_row_tile(m)
    return pl.pallas_call(
        _ln_relu_add_kernel,
        grid=(m // tm,),
        in_specs=[pl.BlockSpec((tm, f), lambda i: (i, 0)),
                  pl.BlockSpec((tm, f), lambda i: (i, 0)),
                  pl.BlockSpec((1, f), lambda i: (0, 0)),
                  pl.BlockSpec((1, f), lambda i: (0, 0))],
        out_specs=pl.BlockSpec((tm, f), lambda i: (i, 0)),
        out_shape=jax.ShapeDtypeStruct((m, f), jnp.float32),
        compiler_params=_cparams("parallel"),
    )(x, res, gamma.reshape(1, f), beta.reshape(1, f))


# --------------------------------------------------------------------------- #
# Fused FFN + residual + LayerNorm (row-tiled)                                #
# --------------------------------------------------------------------------- #
def _ffn_res_ln_kernel(x_ref, w1_ref, b1_ref, w2_ref, b2_ref, g_ref, b_ref, o_ref):
    x = x_ref[...]
    h = jnp.dot(x.astype(jnp.bfloat16), w1_ref[...],
                preferred_element_type=jnp.float32) + b1_ref[...]
    h = jax.nn.gelu(h, approximate=False)          # nn.GELU() default: exact erf
    y = jnp.dot(h.astype(jnp.bfloat16), w2_ref[...],
                preferred_element_type=jnp.float32) + b2_ref[...]
    o_ref[...] = _layernorm(y + x, g_ref[...], b_ref[...])


def pallas_ffn_res_ln(x, w1_bf16, b1, w2_bf16, b2, gamma, beta):
    m, f = x.shape
    hdim = w1_bf16.shape[1]
    tm = _pick_row_tile(m)
    return pl.pallas_call(
        _ffn_res_ln_kernel,
        grid=(m // tm,),
        in_specs=[pl.BlockSpec((tm, f), lambda i: (i, 0)),
                  pl.BlockSpec((f, hdim), lambda i: (0, 0)),
                  pl.BlockSpec((1, hdim), lambda i: (0, 0)),
                  pl.BlockSpec((hdim, f), lambda i: (0, 0)),
                  pl.BlockSpec((1, f), lambda i: (0, 0)),
                  pl.BlockSpec((1, f), lambda i: (0, 0)),
                  pl.BlockSpec((1, f), lambda i: (0, 0))],
        out_specs=pl.BlockSpec((tm, f), lambda i: (i, 0)),
        out_shape=jax.ShapeDtypeStruct((m, f), jnp.float32),
        compiler_params=_cparams("parallel"),
    )(x, w1_bf16, b1.reshape(1, hdim), w2_bf16, b2.reshape(1, f),
      gamma.reshape(1, f), beta.reshape(1, f))


# --------------------------------------------------------------------------- #
# Fused per-batch encoder MSA: QKV + attention(+bias) + merge + res + LN      #
# --------------------------------------------------------------------------- #
def _encoder_msa_kernel(x_ref, wqkv_ref, wm_ref, bm_ref, g_ref, b_ref,
                        mcl_ref, pad_ref, wmcl_ref, o_ref, slab_ref, *,
                        head_num, scale, infla_dim):
    n, f = x_ref.shape
    d = f // head_num
    x = x_ref[...]                                               # (N, F) f32
    qkv = jnp.dot(x.astype(jnp.bfloat16), wqkv_ref[...],
                  preferred_element_type=jnp.float32)            # (N, 3F)
    pad = pad_ref[...]                                           # (N, N)
    for h in range(head_num):
        bias = pad
        for i in range(infla_dim):
            bias = bias + wmcl_ref[i, h] * mcl_ref[i]            # per-head mcl bias
        q = qkv[:, h * d:(h + 1) * d] * scale
        k = qkv[:, f + h * d: f + (h + 1) * d]
        v = qkv[:, 2 * f + h * d: 2 * f + (h + 1) * d]
        s = lax.dot_general(q, k, (((1,), (1,)), ((), ())),
                            preferred_element_type=jnp.float32) + bias
        s = s - jnp.max(s, axis=-1, keepdims=True)
        p = jnp.exp(s)
        p = p * pl.reciprocal(jnp.sum(p, axis=-1, keepdims=True), approx=True)
        slab_ref[:, h * d:(h + 1) * d] = jnp.dot(
            p, v, preferred_element_type=jnp.float32)
    attn = slab_ref[...]                                         # (N, F) lane-dense
    msa = jnp.dot(attn.astype(jnp.bfloat16), wm_ref[...],
                  preferred_element_type=jnp.float32) + bm_ref[...]
    o_ref[...] = _layernorm(msa + x, g_ref[...], b_ref[...])


def pallas_encoder_msa(x, wqkv_bf16, w_merge_bf16, b_merge, ln_g, ln_b,
                       mcl_mat, pad_bias, w_mcl, *, head_num, scale):
    B, N, F = x.shape
    I = mcl_mat.shape[1]
    kern = functools.partial(_encoder_msa_kernel, head_num=head_num,
                             scale=scale, infla_dim=I)

    def full(shape):
        return pl.BlockSpec(shape, lambda b: (0,) * len(shape))

    return pl.pallas_call(
        kern,
        grid=(B,),
        in_specs=[
            pl.BlockSpec((None, N, F), lambda b: (b, 0, 0)),       # x
            full((F, 3 * F)),                                      # wqkv (bf16)
            full((F, F)),                                          # w_merge (bf16)
            full((1, F)),                                          # b_merge
            full((1, F)),                                          # ln gamma
            full((1, F)),                                          # ln beta
            pl.BlockSpec((None, I, N, N), lambda b: (b, 0, 0, 0)), # mcl stack
            pl.BlockSpec((None, N, N), lambda b: (b, 0, 0)),       # pad bias
            pl.BlockSpec(memory_space=pltpu.MemorySpace.SMEM),     # w_mcl (I,H)
        ],
        out_specs=pl.BlockSpec((None, N, F), lambda b: (b, 0, 0)),
        out_shape=jax.ShapeDtypeStruct((B, N, F), jnp.float32),
        scratch_shapes=[pltpu.VMEM((N, F), jnp.float32)],
        compiler_params=_cparams("parallel"),
    )(x, wqkv_bf16, w_merge_bf16, b_merge.reshape(1, F),
      ln_g.reshape(1, F), ln_b.reshape(1, F), mcl_mat, pad_bias, w_mcl)


# --------------------------------------------------------------------------- #
# Fused MCL power iteration (per batch, fully in VMEM)                        #
# --------------------------------------------------------------------------- #
def _static_pow(x, p):
    if float(p).is_integer() and p >= 1:
        acc = x
        for _ in range(int(p) - 1):
            acc = acc * x
        return acc
    # TODO(synk): non-integer inflation exponents rely on generic pow lowering.
    return jnp.power(x, p)


def _mcl_kernel(adj_ref, o_ref, *, inflation, num_iters):
    a = adj_ref[...]                                             # (N, N) f32
    mcl = a * pl.reciprocal(jnp.sum(a, axis=-1, keepdims=True) + 1e-6, approx=True)
    result = mcl
    for i in range(num_iters):
        result = jnp.dot(mcl, result, preferred_element_type=jnp.float32)
        if (i + 1) % 3 == 0:
            result = _static_pow(result, inflation)
        result = result * pl.reciprocal(
            jnp.sum(result, axis=-1, keepdims=True) + 1e-6, approx=True)
    o_ref[...] = result


def pallas_mcl(adj_f32, inflation, num_iters=6):
    B, N, _ = adj_f32.shape
    kern = functools.partial(_mcl_kernel, inflation=inflation, num_iters=num_iters)
    return pl.pallas_call(
        kern,
        grid=(B,),
        in_specs=[pl.BlockSpec((None, N, N), lambda b: (b, 0, 0))],
        out_specs=pl.BlockSpec((None, N, N), lambda b: (b, 0, 0)),
        out_shape=jax.ShapeDtypeStruct((B, N, N), jnp.float32),
        compiler_params=_cparams("parallel"),
    )(adj_f32)


# --------------------------------------------------------------------------- #
# Parameter init (synthetic, deterministic; mirrors GC_T._init_layer_params)  #
# --------------------------------------------------------------------------- #
def init_gc_t_params(key, n_layers, feature_dim, head_num, edge_dim, infla_dim):
    std = 0.02 * (n_layers ** -0.5)

    def nrm(k, shape, s=std):
        return s * jax.random.normal(k, shape, dtype=jnp.float32)

    F = feature_dim
    layers = []
    for i in range(n_layers):
        ks = jax.random.split(jax.random.fold_in(key, i), 10)
        layers.append(dict(
            gcn_w_lin=nrm(ks[0], (F, F)),
            gcn_w_edge=nrm(ks[1], (edge_dim, F)),
            gcn_root_emb=0.02 * jax.random.normal(ks[2], (2, F), dtype=jnp.float32),
            gcn_norm_g=jnp.ones((F,), jnp.float32),
            gcn_norm_b=jnp.zeros((F,), jnp.float32),
            w_mcl=nrm(ks[3], (infla_dim, head_num)),
            wq=nrm(ks[4], (F, F)),
            wk=nrm(ks[5], (F, F)),
            wv=nrm(ks[6], (F, F)),
            w_merge=nrm(ks[7], (F, F)),
            b_merge=jnp.zeros((F,), jnp.float32),
            ln_in_g=jnp.ones((F,), jnp.float32),
            ln_in_b=jnp.zeros((F,), jnp.float32),
            w1=nrm(ks[8], (F, 2 * F)),
            b1=jnp.zeros((2 * F,), jnp.float32),
            w2=nrm(ks[9], (2 * F, F)),
            b2=jnp.zeros((F,), jnp.float32),
            ln_ffn_g=jnp.ones((F,), jnp.float32),
            ln_ffn_b=jnp.zeros((F,), jnp.float32),
        ))
    final = dict(final_g=jnp.ones((F,), jnp.float32),
                 final_b=jnp.zeros((F,), jnp.float32))
    return layers, final


def prepare_gc_t_params(layer_params, final_params):
    """Host-side prep: fuse QKV weights and pre-cast big matmul weights to bf16."""
    prepared = []
    for p in layer_params:
        prepared.append(dict(
            gcn_w_lin_bf16=p["gcn_w_lin"].astype(jnp.bfloat16),
            gcn_w_edge=p["gcn_w_edge"],
            gcn_root_emb=p["gcn_root_emb"],
            gcn_norm_g=p["gcn_norm_g"], gcn_norm_b=p["gcn_norm_b"],
            w_mcl=p["w_mcl"],
            wqkv_bf16=jnp.concatenate([p["wq"], p["wk"], p["wv"]],
                                      axis=1).astype(jnp.bfloat16),
            w_merge_bf16=p["w_merge"].astype(jnp.bfloat16),
            b_merge=p["b_merge"],
            ln_in_g=p["ln_in_g"], ln_in_b=p["ln_in_b"],
            w1_bf16=p["w1"].astype(jnp.bfloat16), b1=p["b1"],
            w2_bf16=p["w2"].astype(jnp.bfloat16), b2=p["b2"],
            ln_ffn_g=p["ln_ffn_g"], ln_ffn_b=p["ln_ffn_b"],
        ))
    return prepared, final_params


# --------------------------------------------------------------------------- #
# Forward pass (eval mode)                                                     #
# --------------------------------------------------------------------------- #
def gc_t_forward(layer_params, final_params, input_x, n_batch, n_per_graph,
                 edge_index, edge_attr, root, max_num_nodes, head_num,
                 infla=(6.0,)):
    B, N = n_batch, max_num_nodes
    F = input_x.shape[-1]
    H = head_num
    d = F // H
    scale = d ** (-0.5)
    M = B * N

    node_feature = input_x.reshape(B, N, F).astype(jnp.float32)

    # ---- layer-invariant graph structure (built once per forward) ----------
    row, col = edge_index[0], edge_index[1]
    edge_mask = row // N
    src = row % N
    tgt = col % N
    # TODO(synk): boolean adjacency scatter kept in plain JAX (setup-only glue).
    adj = jnp.zeros((B, N, N), dtype=bool).at[edge_mask, src, tgt].set(True)
    n_arr = jnp.asarray(n_per_graph, dtype=jnp.int32)
    valid = jnp.arange(N, dtype=jnp.int32)[None, :] < n_arr[:, None]       # (B, N)
    valid_pair = valid[:, :, None] & valid[:, None, :]                     # (B, N, N)
    adj = adj | (jnp.eye(N, dtype=bool)[None] & valid_pair)
    pad_bias = jnp.where(valid_pair, 0.0, -1024.0).astype(jnp.float32)     # (B, N, N)

    adj_f = adj.astype(jnp.float32)
    mcl_mat = jnp.stack([pallas_mcl(adj_f, inf) for inf in infla], axis=1)  # (B,I,N,N)

    output = node_feature   # input_dropout is identity in eval

    for p in layer_params:
        res_flat = output.reshape(M, F)

        # --------------------------- GCNConv --------------------------------
        x_lin = pallas_matmul(res_flat, p["gcn_w_lin_bf16"])               # (M, F)
        edge_emb = edge_attr @ p["gcn_w_edge"]          # tiny K=7 matmul: leave to XLA
        deg = jax.ops.segment_sum(jnp.ones(row.shape, jnp.float32), row,
                                  num_segments=M) + 1.0
        dis = deg ** -0.5                                # deg >= 1, never inf
        norm = dis[row] * dis[col]
        # TODO(synk): edge gather + scatter-add aggregation kept in plain JAX
        # (candidate for a scalar-prefetch Pallas kernel with edge tables in SMEM).
        msg = norm[:, None] * jax.nn.relu(x_lin[row] + edge_emb)
        agg = jax.ops.segment_sum(msg, col, num_segments=M)
        gcn_out = agg + jax.nn.relu(x_lin + p["gcn_root_emb"][root]) / deg[:, None]
        output = pallas_ln_relu_add(gcn_out, res_flat,
                                    p["gcn_norm_g"],
                                    p["gcn_norm_b"]).reshape(B, N, F)

        # --------------------------- Encoder ---------------------------------
        # LN_in(x + merge(MSA(x, pad+mcl bias))) fully fused, per-batch grid.
        x = pallas_encoder_msa(output, p["wqkv_bf16"], p["w_merge_bf16"],
                               p["b_merge"], p["ln_in_g"], p["ln_in_b"],
                               mcl_mat, pad_bias, p["w_mcl"],
                               head_num=H, scale=scale)                    # (B, N, F)
        # LN_ffn(x + FFN(x)) fused, row-tiled.
        x = pallas_ffn_res_ln(x.reshape(M, F), p["w1_bf16"], p["b1"],
                              p["w2_bf16"], p["b2"],
                              p["ln_ffn_g"], p["ln_ffn_b"])
        output = x.reshape(B, N, F)

    out = pallas_layernorm(output.reshape(M, F),
                           final_params["final_g"], final_params["final_b"])
    return out.reshape(B, N, F)


# --------------------------------------------------------------------------- #
# Demo                                                                         #
# --------------------------------------------------------------------------- #
if __name__ == "__main__":
    key = jax.random.PRNGKey(0)

    n_batch = 2
    max_num_nodes = 16
    feature_dim = 32
    head_num = 4
    edge_dim = 7
    n_layers = 2
    infla = [6.0]
    n_per_graph = [12, 10]

    k_x, k_e, k_r, k_p = jax.random.split(key, 4)

    # node features
    input_x = jax.random.normal(
        k_x, (n_batch * max_num_nodes, feature_dim), dtype=jnp.float32)

    # edges: a directed ring (both directions) inside each graph, global indices
    srcs, tgts = [], []
    for b, nb in enumerate(n_per_graph):
        for i in range(nb):
            j = (i + 1) % nb
            srcs += [b * max_num_nodes + i, b * max_num_nodes + j]
            tgts += [b * max_num_nodes + j, b * max_num_nodes + i]
    edge_index = jnp.array([srcs, tgts], dtype=jnp.int32)             # (2, E)
    edge_attr = jax.random.uniform(
        k_e, (edge_index.shape[1], edge_dim), dtype=jnp.float32)

    # root indices for root_emb (Embedding(2, F))
    root = jax.random.randint(k_r, (n_batch * max_num_nodes,), 0, 2, dtype=jnp.int32)

    raw_layers, raw_final = init_gc_t_params(
        k_p, n_layers, feature_dim, head_num, edge_dim, len(infla))
    layer_params, final_params = prepare_gc_t_params(raw_layers, raw_final)

    out = gc_t_forward(layer_params, final_params, input_x, n_batch, n_per_graph,
                       edge_index, edge_attr, root, max_num_nodes, head_num,
                       infla=tuple(infla))
    out = jax.block_until_ready(out)
    assert out.shape == (n_batch, max_num_nodes, feature_dim)
    assert bool(jnp.all(jnp.isfinite(out)))
    print("KERNEL_OK")
</pallas_src>

<mosaic_0001>
module attributes {stable_mosaic.version = 11 : i64} {
  func.func @_mcl_kernel(%arg0: i32, %arg1: memref<1x16x16xf32, #tpu.memory_space<vmem>>, %arg2: memref<1x16x16xf32, #tpu.memory_space<vmem>>) attributes {dimension_semantics = [#tpu.dimension_semantics<parallel>], iteration_bounds = array<i64: 2>, scalar_prefetch = 0 : i64, scratch_operands = 0 : i64, tpu.core_type = #tpu.core_type<tc>, window_params = [{transform_indices = @transform_0, window_bounds = array<i64: 1, 16, 16>}, {transform_indices = @transform_1, window_bounds = array<i64: 1, 16, 16>}]} {
    %c0 = arith.constant 0 : index
    %c0_0 = arith.constant 0 : index
    %c0_1 = arith.constant 0 : index
    %0 = vector.load %arg1[%c0, %c0_0, %c0_1] : memref<1x16x16xf32, #tpu.memory_space<vmem>>, vector<1x16x16xf32>
    %1 = vector.shape_cast %0 : vector<1x16x16xf32> to vector<16x16xf32>
    %cst = arith.constant dense<0.000000e+00> : vector<16xf32>
    %2 = vector.multi_reduction <add>, %1, %cst [1] : vector<16x16xf32> to vector<16xf32>
    %3 = vector.shape_cast %2 : vector<16xf32> to vector<16x1xf32>
    %cst_2 = arith.constant 9.99999997E-7 : f32
    %4 = vector.broadcast %cst_2 : f32 to vector<16x1xf32>
    %5 = arith.addf %3, %4 : vector<16x1xf32>
    %6 = tpu.reciprocal %5 {approx = true} : vector<16x1xf32> -> vector<16x1xf32>
    %7 = vector.broadcast %6 : vector<16x1xf32> to vector<16x16xf32>
    %8 = arith.mulf %1, %7 : vector<16x16xf32>
    %cst_3 = arith.constant dense<0.000000e+00> : vector<16x16xf32>
    %9 = tpu.matmul %8, %8, %cst_3 {dimension_numbers = #tpu.dot_dimension_numbers<[1], [0], [0], [1], [0, 0, 1, 1], [], []>} : vector<16x16xf32>, vector<16x16xf32>, vector<16x16xf32> -> vector<16x16xf32>
    %cst_4 = arith.constant dense<0.000000e+00> : vector<16xf32>
    %10 = vector.multi_reduction <add>, %9, %cst_4 [1] : vector<16x16xf32> to vector<16xf32>
    %11 = vector.shape_cast %10 : vector<16xf32> to vector<16x1xf32>
    %cst_5 = arith.constant 9.99999997E-7 : f32
    %12 = vector.broadcast %cst_5 : f32 to vector<16x1xf32>
    %13 = arith.addf %11, %12 : vector<16x1xf32>
    %14 = tpu.reciprocal %13 {approx = true} : vector<16x1xf32> -> vector<16x1xf32>
    %15 = vector.broadcast %14 : vector<16x1xf32> to vector<16x16xf32>
    %16 = arith.mulf %9, %15 : vector<16x16xf32>
    %cst_6 = arith.constant dense<0.000000e+00> : vector<16x16xf32>
    %17 = tpu.matmul %8, %16, %cst_6 {dimension_numbers = #tpu.dot_dimension_numbers<[1], [0], [0], [1], [0, 0, 1, 1], [], []>} : vector<16x16xf32>, vector<16x16xf32>, vector<16x16xf32> -> vector<16x16xf32>
    %cst_7 = arith.constant dense<0.000000e+00> : vector<16xf32>
    %18 = vector.multi_reduction <add>, %17, %cst_7 [1] : vector<16x16xf32> to vector<16xf32>
    %19 = vector.shape_cast %18 : vector<16xf32> to vector<16x1xf32>
    %cst_8 = arith.constant 9.99999997E-7 : f32
    %20 = vector.broadcast %cst_8 : f32 to vector<16x1xf32>
    %21 = arith.addf %19, %20 : vector<16x1xf32>
    %22 = tpu.reciprocal %21 {approx = true} : vector<16x1xf32> -> vector<16x1xf32>
    %23 = vector.broadcast %22 : vector<16x1xf32> to vector<16x16xf32>
    %24 = arith.mulf %17, %23 : vector<16x16xf32>
    %cst_9 = arith.constant dense<0.000000e+00> : vector<16x16xf32>
    %25 = tpu.matmul %8, %24, %cst_9 {dimension_numbers = #tpu.dot_dimension_numbers<[1], [0], [0], [1], [0, 0, 1, 1], [], []>} : vector<16x16xf32>, vector<16x16xf32>, vector<16x16xf32> -> vector<16x16xf32>
    %26 = arith.mulf %25, %25 : vector<16x16xf32>
    %27 = arith.mulf %26, %25 : vector<16x16xf32>
    %28 = arith.mulf %27, %25 : vector<16x16xf32>
    %29 = arith.mulf %28, %25 : vector<16x16xf32>
    %30 = arith.mulf %29, %25 : vector<16x16xf32>
    %cst_10 = arith.constant dense<0.000000e+00> : vector<16xf32>
    %31 = vector.multi_reduction <add>, %30, %cst_10 [1] : vector<16x16xf32> to vector<16xf32>
    %32 = vector.shape_cast %31 : vector<16xf32> to vector<16x1xf32>
    %cst_11 = arith.constant 9.99999997E-7 : f32
    %33 = vector.broadcast %cst_11 : f32 to vector<16x1xf32>
    %34 = arith.addf %32, %33 : vector<16x1xf32>
    %35 = tpu.reciprocal %34 {approx = true} : vector<16x1xf32> -> vector<16x1xf32>
    %36 = vector.broadcast %35 : vector<16x1xf32> to vector<16x16xf32>
    %37 = arith.mulf %30, %36 : vector<16x16xf32>
    %cst_12 = arith.constant dense<0.000000e+00> : vector<16x16xf32>
    %38 = tpu.matmul %8, %37, %cst_12 {dimension_numbers = #tpu.dot_dimension_numbers<[1], [0], [0], [1], [0, 0, 1, 1], [], []>} : vector<16x16xf32>, vector<16x16xf32>, vector<16x16xf32> -> vector<16x16xf32>
    %cst_13 = arith.constant dense<0.000000e+00> : vector<16xf32>
    %39 = vector.multi_reduction <add>, %38, %cst_13 [1] : vector<16x16xf32> to vector<16xf32>
    %40 = vector.shape_cast %39 : vector<16xf32> to vector<16x1xf32>
    %cst_14 = arith.constant 9.99999997E-7 : f32
    %41 = vector.broadcast %cst_14 : f32 to vector<16x1xf32>
    %42 = arith.addf %40, %41 : vector<16x1xf32>
    %43 = tpu.reciprocal %42 {approx = true} : vector<16x1xf32> -> vector<16x1xf32>
    %44 = vector.broadcast %43 : vector<16x1xf32> to vector<16x16xf32>
    %45 = arith.mulf %38, %44 : vector<16x16xf32>
    %cst_15 = arith.constant dense<0.000000e+00> : vector<16x16xf32>
    %46 = tpu.matmul %8, %45, %cst_15 {dimension_numbers = #tpu.dot_dimension_numbers<[1], [0], [0], [1], [0, 0, 1, 1], [], []>} : vector<16x16xf32>, vector<16x16xf32>, vector<16x16xf32> -> vector<16x16xf32>
    %cst_16 = arith.constant dense<0.000000e+00> : vector<16xf32>
    %47 = vector.multi_reduction <add>, %46, %cst_16 [1] : vector<16x16xf32> to vector<16xf32>
    %48 = vector.shape_cast %47 : vector<16xf32> to vector<16x1xf32>
    %cst_17 = arith.constant 9.99999997E-7 : f32
    %49 = vector.broadcast %cst_17 : f32 to vector<16x1xf32>
    %50 = arith.addf %48, %49 : vector<16x1xf32>
    %51 = tpu.reciprocal %50 {approx = true} : vector<16x1xf32> -> vector<16x1xf32>
    %52 = vector.broadcast %51 : vector<16x1xf32> to vector<16x16xf32>
    %53 = arith.mulf %46, %52 : vector<16x16xf32>
    %cst_18 = arith.constant dense<0.000000e+00> : vector<16x16xf32>
    %54 = tpu.matmul %8, %53, %cst_18 {dimension_numbers = #tpu.dot_dimension_numbers<[1], [0], [0], [1], [0, 0, 1, 1], [], []>} : vector<16x16xf32>, vector<16x16xf32>, vector<16x16xf32> -> vector<16x16xf32>
    %55 = arith.mulf %54, %54 : vector<16x16xf32>
    %56 = arith.mulf %55, %54 : vector<16x16xf32>
    %57 = arith.mulf %56, %54 : vector<16x16xf32>
    %58 = arith.mulf %57, %54 : vector<16x16xf32>
    %59 = arith.mulf %58, %54 : vector<16x16xf32>
    %cst_19 = arith.constant dense<0.000000e+00> : vector<16xf32>
    %60 = vector.multi_reduction <add>, %59, %cst_19 [1] : vector<16x16xf32> to vector<16xf32>
    %61 = vector.shape_cast %60 : vector<16xf32> to vector<16x1xf32>
    %cst_20 = arith.constant 9.99999997E-7 : f32
    %62 = vector.broadcast %cst_20 : f32 to vector<16x1xf32>
    %63 = arith.addf %61, %62 : vector<16x1xf32>
    %64 = tpu.reciprocal %63 {approx = true} : vector<16x1xf32> -> vector<16x1xf32>
    %65 = vector.broadcast %64 : vector<16x1xf32> to vector<16x16xf32>
    %66 = arith.mulf %59, %65 : vector<16x16xf32>
    %c0_21 = arith.constant 0 : index
    %c0_22 = arith.constant 0 : index
    %c0_23 = arith.constant 0 : index
    %67 = vector.load %arg2[%c0_21, %c0_22, %c0_23] : memref<1x16x16xf32, #tpu.memory_space<vmem>>, vector<1x16x16xf32>
    %68 = vector.shape_cast %67 : vector<1x16x16xf32> to vector<16x16xf32>
    %69 = vector.shape_cast %66 : vector<16x16xf32> to vector<1x16x16xf32>
    tpu.vector_store %arg2[%c0_21, %c0_22, %c0_23], %69 {strides = array<i32>} : memref<1x16x16xf32, #tpu.memory_space<vmem>>, vector<1x16x16xf32>,
    return
  }
  func.func @transform_0(%arg0: i32) -> (i32, i32, i32) {
    %c0_i32 = arith.constant 0 : i32
    %c0_i32_0 = arith.constant 0 : i32
    %c0_i32_1 = arith.constant 0 : i32
    return %arg0, %c0_i32, %c0_i32_0 : i32, i32, i32
  }
  func.func @transform_1(%arg0: i32) -> (i32, i32, i32) {
    %c0_i32 = arith.constant 0 : i32
    %c0_i32_0 = arith.constant 0 : i32
    %c0_i32_1 = arith.constant 0 : i32
    return %arg0, %c0_i32, %c0_i32_0 : i32, i32, i32
  }
}

</mosaic_0001>

<llo_original>
// kernel: tpu_custom_call.1
$region0: #{tpu_custom_call.1}
  #allocation0 [shape = 'u32[]', space=smem, size = 0x4, offset = 0x4, fixed_abs, tag = 'smem constant byte address 0x4 - core index']
  #allocation1 [shape = 'u32[144,128]{1,0:T(1,128)}', space=vmem, size = 0x12000, scoped, tag = 'internal scratch']
  %s0 = inlined_call_operand.hbm [shape: f32[2,16,16], index: 0, kind: input, shape index: {}]
  %s1 = inlined_call_operand.hbm [shape: f32[2,16,16], index: 1, kind: output, shape index: {}]
  %s2 = sld [smem:[#allocation0]]
  $region41: #{tpu_custom_call.1} parent=0
    _
  %s4 = ssub.s32 1, %s2
  %s5 = scalar_select 0, %s4, %s2
  $region1: #{tpu_custom_call.1} parent=0
    #allocation2 [shape = 'u8[16384]{0}', space=vmem, size = 0x4000, scoped, tag = 'input window, operand 0']
    #allocation3 [shape = 's32[2]{0}', space=sflag, size = 0x8, scoped, tag = 'scoped memory for tpu_custom_call.1']
    #allocation4 [shape = 's32[2]{0}', space=sflag, size = 0x8, scoped, tag = 'scoped memory for tpu_custom_call.1']
    #allocation5 [shape = 'u8[16384]{0}', space=vmem, size = 0x4000, scoped, tag = 'output window, operand 0']
    %6 = vsyncpa [#allocation3], 0
    %s7 = scalar_lea.sflag [#allocation3], 1
    %8 = vsyncpa %s7, 0
    %9 = vsyncpa [#allocation4], 0
    %s10 = scalar_lea.sflag [#allocation4], 1
    %11 = vsyncpa %s10, 0
    loop: start=0, step=1, limit=4
    $region2: #{tpu_custom_call.1} parent=1 // loop_pre_header
      _
    $region3: #{tpu_custom_call.1} parent=1 // loop_header
      %s13 = sphi 0, %s17
      %p14 = scmp.ge.s32.totalorder %s13, 4
      %s23 = sphi 0, %s25
      %s26 = sphi 0, %s23
      %s27 = sphi 0, %s26
      %s43 = sphi 0, %s27
      %s49 = sphi 0, %s51
      %s52 = sphi 0, %s49
      %s53 = sphi 0, %s52
      %s69 = sphi 0, %s53
    $region4: #{tpu_custom_call.1} parent=1 // loop_header_branch
      %16 = sbr.rel (%p14) target = $region8
    $region5: #{tpu_custom_call.1} parent=1 // loop_body
      %s18 = ssub.s32 %s13, 1
      %s19 = ssub.s32 %s13, 2
      %s20 = sadd.s32 %s13, 1
      %s21 = ssub.s32 %s13, %s20
      %p22 = scmp.eq.s32.totalorder %s21, 0
      %s24 = sadd.s32 %s23, 1
      %s25 = scalar_select %p22, %s23, %s24
      %p28 = pneg %p22
      %p29 = scmp.eq.s32.totalorder %s13, 1
      %p30 = por %p28, %p29
      %p31 = scmp.ne.s32.totalorder %s23, %s26
      %p32 = scmp.eq.s32.totalorder %s13, 0
      %p33 = por %p31, %p32
      %p34 = scmp.ne.s32.totalorder %s23, %s26
      %p35 = scmp.eq.s32.totalorder %s18, 1
      %p36 = por %p34, %p35
      %p37 = scmp.ne.s32.totalorder %s26, %s27
      %p38 = scmp.eq.s32.totalorder %s18, 0
      %p39 = por %p37, %p38
      %p40 = scmp.ne.s32.totalorder %s26, %s27
      %p41 = scmp.eq.s32.totalorder %s19, 1
      %p42 = por %p40, %p41
      %p44 = scmp.ne.s32.totalorder %s27, %s43
      %p45 = scmp.eq.s32.totalorder %s19, 0
      %p46 = por %p44, %p45
      %s47 = ssub.s32 %s13, %s20
      %p48 = scmp.eq.s32.totalorder %s47, 0
      %s50 = sadd.s32 %s49, 1
      %s51 = scalar_select %p48, %s49, %s50
      %p54 = pneg %p48
      %p55 = scmp.eq.s32.totalorder %s13, 1
      %p56 = por %p54, %p55
      %p57 = scmp.ne.s32.totalorder %s49, %s52
      %p58 = scmp.eq.s32.totalorder %s13, 0
      %p59 = por %p57, %p58
      %p60 = scmp.ne.s32.totalorder %s49, %s52
      %p61 = scmp.eq.s32.totalorder %s18, 1
      %p62 = por %p60, %p61
      %p63 = scmp.ne.s32.totalorder %s52, %s53
      %p64 = scmp.eq.s32.totalorder %s18, 0
      %p65 = por %p63, %p64
      %p66 = scmp.ne.s32.totalorder %s52, %s53
      %p67 = scmp.eq.s32.totalorder %s19, 1
      %p68 = por %p66, %p67
      %p70 = scmp.ne.s32.totalorder %s53, %s69
      %p71 = scmp.eq.s32.totalorder %s19, 0
      %p72 = por %p70, %p71
      %p73 = scmp.le.s32.totalorder 1, %s13
      %p74 = scmp.lt.s32.totalorder %s13, 3
      %p75 = pnand %p73, %p74
      %p76 = pneg %p75
      // Predicated region
      $region9: #{tpu_custom_call.1} parent=5 // pred_check
        _
      $region10: #{tpu_custom_call.1} parent=5 // pred_check_branch
        %78 = sbr.rel (%p75) target = $region12
      $region11: #{tpu_custom_call.1} parent=5 // pred_region
        %s79 = ssub.s32 %s13, 1
      $region12: #{tpu_custom_call.1} parent=5 // pred_fallthru
        _
      %p80 = scmp.lt.s32.totalorder %s13, 2
      // Predicated region
      $region13: #{tpu_custom_call.1} parent=5 // pred_check
        %p81 = pneg %p80
      $region14: #{tpu_custom_call.1} parent=5 // pred_check_branch
        %83 = sbr.rel (%p81) target = $region16
      $region15: #{tpu_custom_call.1} parent=5 // pred_region
        // Predicated region
        $region17: #{tpu_custom_call.1} parent=15 // pred_check
          %p84 = pneg %p33
        $region18: #{tpu_custom_call.1} parent=15 // pred_check_branch
          %86 = sbr.rel (%p84) target = $region20
        $region19: #{tpu_custom_call.1} parent=15 // pred_region
          %s87 = sand.u32 %s23, 1
          %s88 = scalar_lea.sflag [#allocation3], %s87
          %s89 = sand.u32 %s23, 1
          %s90 = smul.addr %s89, 16
          %s91 = scalar_lea.vmem [#allocation2], %s90
          %s93 = ssub.s32 256, 256
          %94 = vsyncadd %s88, %s93
          %s95 = smul.addr %s13, 2
          %s96 = smul.addr %s95, 128
          %s97 = scalar_lea.hbm %s0, %s96
          %s98 = sshll.u32 %s91, 4
          %s99 = int_to_ptr.vmem [resolvable:$true] %s98
          %104 = dma.hbm_to_vmem [thread:$0]  %s97, 256, %s99, %s88, 128, 128, 8
        $region20: #{tpu_custom_call.1} parent=15 // pred_fallthru
          _
      $region16: #{tpu_custom_call.1} parent=5 // pred_fallthru
        _
      %p105 = scmp.le.s32.totalorder 1, %s13
      %p106 = scmp.lt.s32.totalorder %s13, 3
      %p107 = pnand %p105, %p106
      %p108 = pneg %p107
      // Predicated region
      $region21: #{tpu_custom_call.1} parent=5 // pred_check
        _
      $region22: #{tpu_custom_call.1} parent=5 // pred_check_branch
        %110 = sbr.rel (%p107) target = $region24
      $region23: #{tpu_custom_call.1} parent=5 // pred_region
        %s111 = ssub.s32 %s13, 1
        %s112 = sand.u32 %s26, 1
        %s113 = scalar_lea.sflag [#allocation3], %s112
        %s114 = sand.u32 %s26, 1
        %s115 = smul.addr %s114, 16
        %s116 = scalar_lea.vmem [#allocation2], %s115
        // Predicated region
        $region25: #{tpu_custom_call.1} parent=23 // pred_check
          %p117 = pneg %p39
        $region26: #{tpu_custom_call.1} parent=23 // pred_check_branch
          %119 = sbr.rel (%p117) target = $region28
        $region27: #{tpu_custom_call.1} parent=23 // pred_region
          %120 = dma.done %s113, 256
        $region28: #{tpu_custom_call.1} parent=23 // pred_fallthru
          _
        %s121 = sand.u32 %s26, 1
        %s122 = scalar_lea.sflag [#allocation3], %s121
        %s123 = sand.u32 %s26, 1
        %s124 = smul.addr %s123, 16
        %s125 = scalar_lea.vmem [#allocation2], %s124
        %p126 = pneg %p39
        %p127 = pneg %p36
        %p128 = pneg %p65
        %p129 = pneg %p62
        %s130 = sand.u32 %s52, 1
        %s131 = scalar_lea.sflag [#allocation4], %s130
        %s132 = sand.u32 %s52, 1
        %s133 = smul.addr %s132, 16
        %s134 = scalar_lea.vmem [#allocation5], %s133
        %v135 = vld [vmem:[%s116] sm:$0xff]
        %v136 = vld [vmem:[%s116 + $0x8] sm:$0xff]
        %vm137 = vcmask 130048
        %v138 = vsel %vm137, %v135, 0.0
        %139 = vadd.xlane.f32.xlu0 %v138
        %v140 = vpop.xlane.xlu0 %139
        %v141 = vsel %vm137, %v136, 0.0
        %142 = vadd.xlane.f32.xlu0 %v141
        %v143 = vpop.xlane.xlu0 %142
        %v144 = vadd.f32 %v140, 1e-06
        %v145 = vadd.f32 %v143, 1e-06
        %v146 = vrcp.pop %v144
        %v147 = vrcp.pop %v145
        %v148 = vmul.f32 %v135, %v146
        %v149 = vmul.f32 %v136, %v147
        %v151 = vsel %vm137, %v148, 0
        %v154 = vsel %vm137, %v149, 0
        %156 = vmatprep.subr.mxu0 0.0
        %157 = vmatpush1.msra.mxu0 0.0
        %158 = vmatprep.subr.mxu0 0.0
        %159 = vmatpush1.msra.mxu0 0.0
        %160 = vmatprep.subr.mxu0 0.0
        %161 = vmatpush1.msra.mxu0 0.0
        %162 = vmatprep.subr.mxu0 0.0
        %163 = vmatpush1.msra.mxu0 0.0
        %164 = vmatprep.subr.mxu0 0.0
        %165 = vmatpush1.msra.mxu0 0.0
        %166 = vmatprep.subr.mxu0 0.0
        %167 = vmatpush1.msra.mxu0 0.0
        %168 = vmatprep.subr.mxu0 0.0
        %169 = vmatpush1.msra.mxu0 0.0
        %170 = vmatprep.subr.mxu0 0.0
        %171 = vmatpush1.msra.mxu0 0.0
        %172 = vmatprep.subr.mxu0 0.0
        %173 = vmatpush1.msra.mxu0 0.0
        %174 = vmatprep.subr.mxu0 0.0
        %175 = vmatpush1.msra.mxu0 0.0
        %176 = vmatprep.subr.mxu0 0.0
        %177 = vmatpush1.msra.mxu0 0.0
        %178 = vmatprep.subr.mxu0 0.0
        %179 = vmatpush1.msra.mxu0 0.0
        %180 = vmatprep.subr.mxu0 0.0
        %181 = vmatpush1.msra.mxu0 0.0
        %182 = vmatprep.subr.mxu0 0.0
        %183 = vmatpush1.msra.mxu0 0.0
        %184 = vmatprep.subr.mxu0 0.0
        %185 = vmatpush1.msra.mxu0 %v149
        %186 = vmatprep.subr.mxu0 0.0
        %187 = vmatpush1.msra.mxu0 %v148
        %188 = vmatprep.subr.mxu0 0.0
        %189 = vmatpush2.msra.mxu0 0.0
        %190 = vmatprep.subr.mxu0 0.0
        %191 = vmatpush2.msra.mxu0 0.0
        %192 = vmatprep.subr.mxu0 0.0
        %193 = vmatpush2.msra.mxu0 0.0
        %194 = vmatprep.subr.mxu0 0.0
        %195 = vmatpush2.msra.mxu0 0.0
        %196 = vmatprep.subr.mxu0 0.0
        %197 = vmatpush2.msra.mxu0 0.0
        %198 = vmatprep.subr.mxu0 0.0
        %199 = vmatpush2.msra.mxu0 0.0
        %200 = vmatprep.subr.mxu0 0.0
        %201 = vmatpush2.msra.mxu0 0.0
        %202 = vmatprep.subr.mxu0 0.0
        %203 = vmatpush2.msra.mxu0 0.0
        %204 = vmatprep.subr.mxu0 0.0
        %205 = vmatpush2.msra.mxu0 0.0
        %206 = vmatprep.subr.mxu0 0.0
        %207 = vmatpush2.msra.mxu0 0.0
        %208 = vmatprep.subr.mxu0 0.0
        %209 = vmatpush2.msra.mxu0 0.0
        %210 = vmatprep.subr.mxu0 0.0
        %211 = vmatpush2.msra.mxu0 0.0
        %212 = vmatprep.subr.mxu0 0.0
        %213 = vmatpush2.msra.mxu0 0.0
        %214 = vmatprep.subr.mxu0 0.0
        %215 = vmatpush2.msra.mxu0 0.0
        %216 = vmatprep.subr.mxu0 0.0
        %217 = vmatpush2.msra.mxu0 0.0
        %218 = vmatprep.subr.mxu0 0.0
        %219 = vmatpush2.msra.mxu0 0.0
        %220 = vmatprep.mubr.f32.mxu0 0.0
        %221 = vmatmul.mubr.f32.gmra.mxu0 %v151
        %v222 = vpop.f32.mrf.mxu0
        %v223 = vadd.f32 0.0, %v222
        %v224 = vpop.f32.mrf.mxu0
        %225 = vmatprep.mubr.f32.mxu0 0.0
        %226 = vmatmul.mubr.f32.gmra.mxu0 %v154
        %v227 = vpop.f32.mrf.mxu0
        %v228 = vadd.f32 0.0, %v227
        %v229 = vpop.f32.mrf.mxu0
        %230 = vdwg.mxu0
        %v231 = vsel %vm137, %v223, 0.0
        %232 = vadd.xlane.f32.xlu0 %v231
        %v233 = vpop.xlane.xlu0 %232
        %v234 = vsel %vm137, %v228, 0.0
        %235 = vadd.xlane.f32.xlu0 %v234
        %v236 = vpop.xlane.xlu0 %235
        %v237 = vadd.f32 %v233, 1e-06
        %v238 = vadd.f32 %v236, 1e-06
        %v239 = vrcp.pop %v237
        %v240 = vrcp.pop %v238
        %v241 = vmul.f32 %v223, %v239
        %v242 = vmul.f32 %v228, %v240
        %243 = vmatprep.subr.mxu0 0.0
        %244 = vmatpush1.msra.mxu0 0.0
        %245 = vmatprep.subr.mxu0 0.0
        %246 = vmatpush1.msra.mxu0 0.0
        %247 = vmatprep.subr.mxu0 0.0
        %248 = vmatpush1.msra.mxu0 0.0
        %249 = vmatprep.subr.mxu0 0.0
        %250 = vmatpush1.msra.mxu0 0.0
        %251 = vmatprep.subr.mxu0 0.0
        %252 = vmatpush1.msra.mxu0 0.0
        %253 = vmatprep.subr.mxu0 0.0
        %254 = vmatpush1.msra.mxu0 0.0
        %255 = vmatprep.subr.mxu0 0.0
        %256 = vmatpush1.msra.mxu0 0.0
        %257 = vmatprep.subr.mxu0 0.0
        %258 = vmatpush1.msra.mxu0 0.0
        %259 = vmatprep.subr.mxu0 0.0
        %260 = vmatpush1.msra.mxu0 0.0
        %261 = vmatprep.subr.mxu0 0.0
        %262 = vmatpush1.msra.mxu0 0.0
        %263 = vmatprep.subr.mxu0 0.0
        %264 = vmatpush1.msra.mxu0 0.0
        %265 = vmatprep.subr.mxu0 0.0
        %266 = vmatpush1.msra.mxu0 0.0
        %267 = vmatprep.subr.mxu0 0.0
        %268 = vmatpush1.msra.mxu0 0.0
        %269 = vmatprep.subr.mxu0 0.0
        %270 = vmatpush1.msra.mxu0 0.0
        %271 = vmatprep.subr.mxu0 0.0
        %272 = vmatpush1.msra.mxu0 %v242
        %273 = vmatprep.subr.mxu0 0.0
        %274 = vmatpush1.msra.mxu0 %v241
        %275 = vmatprep.subr.mxu0 0.0
        %276 = vmatpush2.msra.mxu0 0.0
        %277 = vmatprep.subr.mxu0 0.0
        %278 = vmatpush2.msra.mxu0 0.0
        %279 = vmatprep.subr.mxu0 0.0
        %280 = vmatpush2.msra.mxu0 0.0
        %281 = vmatprep.subr.mxu0 0.0
        %282 = vmatpush2.msra.mxu0 0.0
        %283 = vmatprep.subr.mxu0 0.0
        %284 = vmatpush2.msra.mxu0 0.0
        %285 = vmatprep.subr.mxu0 0.0
        %286 = vmatpush2.msra.mxu0 0.0
        %287 = vmatprep.subr.mxu0 0.0
        %288 = vmatpush2.msra.mxu0 0.0
        %289 = vmatprep.subr.mxu0 0.0
        %290 = vmatpush2.msra.mxu0 0.0
        %291 = vmatprep.subr.mxu0 0.0
        %292 = vmatpush2.msra.mxu0 0.0
        %293 = vmatprep.subr.mxu0 0.0
        %294 = vmatpush2.msra.mxu0 0.0
        %295 = vmatprep.subr.mxu0 0.0
        %296 = vmatpush2.msra.mxu0 0.0
        %297 = vmatprep.subr.mxu0 0.0
        %298 = vmatpush2.msra.mxu0 0.0
        %299 = vmatprep.subr.mxu0 0.0
        %300 = vmatpush2.msra.mxu0 0.0
        %301 = vmatprep.subr.mxu0 0.0
        %302 = vmatpush2.msra.mxu0 0.0
        %303 = vmatprep.subr.mxu0 0.0
        %304 = vmatpush2.msra.mxu0 0.0
        %305 = vmatprep.subr.mxu0 0.0
        %306 = vmatpush2.msra.mxu0 0.0
        %307 = vmatprep.mubr.f32.mxu0 0.0
        %308 = vmatmul.mubr.f32.gmra.mxu0 %v151
        %v309 = vpop.f32.mrf.mxu0
        %v310 = vadd.f32 0.0, %v309
        %v311 = vpop.f32.mrf.mxu0
        %312 = vmatprep.mubr.f32.mxu0 0.0
        %313 = vmatmul.mubr.f32.gmra.mxu0 %v154
        %v314 = vpop.f32.mrf.mxu0
        %v315 = vadd.f32 0.0, %v314
        %v316 = vpop.f32.mrf.mxu0
        %317 = vdwg.mxu0
        %v318 = vsel %vm137, %v310, 0.0
        %319 = vadd.xlane.f32.xlu0 %v318
        %v320 = vpop.xlane.xlu0 %319
        %v321 = vsel %vm137, %v315, 0.0
        %322 = vadd.xlane.f32.xlu0 %v321
        %v323 = vpop.xlane.xlu0 %322
        %v324 = vadd.f32 %v320, 1e-06
        %v325 = vadd.f32 %v323, 1e-06
        %v326 = vrcp.pop %v324
        %v327 = vrcp.pop %v325
        %v328 = vmul.f32 %v310, %v326
        %v329 = vmul.f32 %v315, %v327
        %330 = vmatprep.subr.mxu0 0.0
        %331 = vmatpush1.msra.mxu0 0.0
        %332 = vmatprep.subr.mxu0 0.0
        %333 = vmatpush1.msra.mxu0 0.0
        %334 = vmatprep.subr.mxu0 0.0
        %335 = vmatpush1.msra.mxu0 0.0
        %336 = vmatprep.subr.mxu0 0.0
        %337 = vmatpush1.msra.mxu0 0.0
        %338 = vmatprep.subr.mxu0 0.0
        %339 = vmatpush1.msra.mxu0 0.0
        %340 = vmatprep.subr.mxu0 0.0
        %341 = vmatpush1.msra.mxu0 0.0
        %342 = vmatprep.subr.mxu0 0.0
        %343 = vmatpush1.msra.mxu0 0.0
        %344 = vmatprep.subr.mxu0 0.0
        %345 = vmatpush1.msra.mxu0 0.0
        %346 = vmatprep.subr.mxu0 0.0
        %347 = vmatpush1.msra.mxu0 0.0
        %348 = vmatprep.subr.mxu0 0.0
        %349 = vmatpush1.msra.mxu0 0.0
        %350 = vmatprep.subr.mxu0 0.0
        %351 = vmatpush1.msra.mxu0 0.0
        %352 = vmatprep.subr.mxu0 0.0
        %353 = vmatpush1.msra.mxu0 0.0
        %354 = vmatprep.subr.mxu0 0.0
        %355 = vmatpush1.msra.mxu0 0.0
        %356 = vmatprep.subr.mxu0 0.0
        %357 = vmatpush1.msra.mxu0 0.0
        %358 = vmatprep.subr.mxu0 0.0
        %359 = vmatpush1.msra.mxu0 %v329
        %360 = vmatprep.subr.mxu0 0.0
        %361 = vmatpush1.msra.mxu0 %v328
        %362 = vmatprep.subr.mxu0 0.0
        %363 = vmatpush2.msra.mxu0 0.0
        %364 = vmatprep.subr.mxu0 0.0
        %365 = vmatpush2.msra.mxu0 0.0
        %366 = vmatprep.subr.mxu0 0.0
        %367 = vmatpush2.msra.mxu0 0.0
        %368 = vmatprep.subr.mxu0 0.0
        %369 = vmatpush2.msra.mxu0 0.0
        %370 = vmatprep.subr.mxu0 0.0
        %371 = vmatpush2.msra.mxu0 0.0
        %372 = vmatprep.subr.mxu0 0.0
        %373 = vmatpush2.msra.mxu0 0.0
        %374 = vmatprep.subr.mxu0 0.0
        %375 = vmatpush2.msra.mxu0 0.0
        %376 = vmatprep.subr.mxu0 0.0
        %377 = vmatpush2.msra.mxu0 0.0
        %378 = vmatprep.subr.mxu0 0.0
        %379 = vmatpush2.msra.mxu0 0.0
        %380 = vmatprep.subr.mxu0 0.0
        %381 = vmatpush2.msra.mxu0 0.0
        %382 = vmatprep.subr.mxu0 0.0
        %383 = vmatpush2.msra.mxu0 0.0
        %384 = vmatprep.subr.mxu0 0.0
        %385 = vmatpush2.msra.mxu0 0.0
        %386 = vmatprep.subr.mxu0 0.0
        %387 = vmatpush2.msra.mxu0 0.0
        %388 = vmatprep.subr.mxu0 0.0
        %389 = vmatpush2.msra.mxu0 0.0
        %390 = vmatprep.subr.mxu0 0.0
        %391 = vmatpush2.msra.mxu0 0.0
        %392 = vmatprep.subr.mxu0 0.0
        %393 = vmatpush2.msra.mxu0 0.0
        %394 = vmatprep.mubr.f32.mxu0 0.0
        %395 = vmatmul.mubr.f32.gmra.mxu0 %v151
        %v396 = vpop.f32.mrf.mxu0
        %v397 = vadd.f32 0.0, %v396
        %v398 = vpop.f32.mrf.mxu0
        %399 = vmatprep.mubr.f32.mxu0 0.0
        %400 = vmatmul.mubr.f32.gmra.mxu0 %v154
        %v401 = vpop.f32.mrf.mxu0
        %v402 = vadd.f32 0.0, %v401
        %v403 = vpop.f32.mrf.mxu0
        %404 = vdwg.mxu0
        %v405 = vmul.f32 %v397, %v397
        %v406 = vmul.f32 %v402, %v402
        %v407 = vmul.f32 %v405, %v397
        %v408 = vmul.f32 %v406, %v402
        %v409 = vmul.f32 %v407, %v397
        %v410 = vmul.f32 %v408, %v402
        %v411 = vmul.f32 %v409, %v397
        %v412 = vmul.f32 %v410, %v402
        %v413 = vmul.f32 %v411, %v397
        %v414 = vmul.f32 %v412, %v402
        %v415 = vsel %vm137, %v413, 0.0
        %416 = vadd.xlane.f32.xlu0 %v415
        %v417 = vpop.xlane.xlu0 %416
        %v418 = vsel %vm137, %v414, 0.0
        %419 = vadd.xlane.f32.xlu0 %v418
        %v420 = vpop.xlane.xlu0 %419
        %v421 = vadd.f32 %v417, 1e-06
        %v422 = vadd.f32 %v420, 1e-06
        %v423 = vrcp.pop %v421
        %v424 = vrcp.pop %v422
        %v425 = vmul.f32 %v413, %v423
        %v426 = vmul.f32 %v414, %v424
        %427 = vmatprep.subr.mxu0 0.0
        %428 = vmatpush1.msra.mxu0 0.0
        %429 = vmatprep.subr.mxu0 0.0
        %430 = vmatpush1.msra.mxu0 0.0
        %431 = vmatprep.subr.mxu0 0.0
        %432 = vmatpush1.msra.mxu0 0.0
        %433 = vmatprep.subr.mxu0 0.0
        %434 = vmatpush1.msra.mxu0 0.0
        %435 = vmatprep.subr.mxu0 0.0
        %436 = vmatpush1.msra.mxu0 0.0
        %437 = vmatprep.subr.mxu0 0.0
        %438 = vmatpush1.msra.mxu0 0.0
        %439 = vmatprep.subr.mxu0 0.0
        %440 = vmatpush1.msra.mxu0 0.0
        %441 = vmatprep.subr.mxu0 0.0
        %442 = vmatpush1.msra.mxu0 0.0
        %443 = vmatprep.subr.mxu0 0.0
        %444 = vmatpush1.msra.mxu0 0.0
        %445 = vmatprep.subr.mxu0 0.0
        %446 = vmatpush1.msra.mxu0 0.0
        %447 = vmatprep.subr.mxu0 0.0
        %448 = vmatpush1.msra.mxu0 0.0
        %449 = vmatprep.subr.mxu0 0.0
        %450 = vmatpush1.msra.mxu0 0.0
        %451 = vmatprep.subr.mxu0 0.0
        %452 = vmatpush1.msra.mxu0 0.0
        %453 = vmatprep.subr.mxu0 0.0
        %454 = vmatpush1.msra.mxu0 0.0
        %455 = vmatprep.subr.mxu0 0.0
        %456 = vmatpush1.msra.mxu0 %v426
        %457 = vmatprep.subr.mxu0 0.0
        %458 = vmatpush1.msra.mxu0 %v425
        %459 = vmatprep.subr.mxu0 0.0
        %460 = vmatpush2.msra.mxu0 0.0
        %461 = vmatprep.subr.mxu0 0.0
        %462 = vmatpush2.msra.mxu0 0.0
        %463 = vmatprep.subr.mxu0 0.0
        %464 = vmatpush2.msra.mxu0 0.0
        %465 = vmatprep.subr.mxu0 0.0
        %466 = vmatpush2.msra.mxu0 0.0
        %467 = vmatprep.subr.mxu0 0.0
        %468 = vmatpush2.msra.mxu0 0.0
        %469 = vmatprep.subr.mxu0 0.0
        %470 = vmatpush2.msra.mxu0 0.0
        %471 = vmatprep.subr.mxu0 0.0
        %472 = vmatpush2.msra.mxu0 0.0
        %473 = vmatprep.subr.mxu0 0.0
        %474 = vmatpush2.msra.mxu0 0.0
        %475 = vmatprep.subr.mxu0 0.0
        %476 = vmatpush2.msra.mxu0 0.0
        %477 = vmatprep.subr.mxu0 0.0
        %478 = vmatpush2.msra.mxu0 0.0
        %479 = vmatprep.subr.mxu0 0.0
        %480 = vmatpush2.msra.mxu0 0.0
        %481 = vmatprep.subr.mxu0 0.0
        %482 = vmatpush2.msra.mxu0 0.0
        %483 = vmatprep.subr.mxu0 0.0
        %484 = vmatpush2.msra.mxu0 0.0
        %485 = vmatprep.subr.mxu0 0.0
        %486 = vmatpush2.msra.mxu0 0.0
        %487 = vmatprep.subr.mxu0 0.0
        %488 = vmatpush2.msra.mxu0 0.0
        %489 = vmatprep.subr.mxu0 0.0
        %490 = vmatpush2.msra.mxu0 0.0
        %491 = vmatprep.mubr.f32.mxu0 0.0
        %492 = vmatmul.mubr.f32.gmra.mxu0 %v151
        %v493 = vpop.f32.mrf.mxu0
        %v494 = vadd.f32 0.0, %v493
        %v495 = vpop.f32.mrf.mxu0
        %496 = vmatprep.mubr.f32.mxu0 0.0
        %497 = vmatmul.mubr.f32.gmra.mxu0 %v154
        %v498 = vpop.f32.mrf.mxu0
        %v499 = vadd.f32 0.0, %v498
        %v500 = vpop.f32.mrf.mxu0
        %501 = vdwg.mxu0
        %v502 = vsel %vm137, %v494, 0.0
        %503 = vadd.xlane.f32.xlu0 %v502
        %v504 = vpop.xlane.xlu0 %503
        %v505 = vsel %vm137, %v499, 0.0
        %506 = vadd.xlane.f32.xlu0 %v505
        %v507 = vpop.xlane.xlu0 %506
        %v508 = vadd.f32 %v504, 1e-06
        %v509 = vadd.f32 %v507, 1e-06
        %v510 = vrcp.pop %v508
        %v511 = vrcp.pop %v509
        %v512 = vmul.f32 %v494, %v510
        %v513 = vmul.f32 %v499, %v511
        %514 = vmatprep.subr.mxu0 0.0
        %515 = vmatpush1.msra.mxu0 0.0
        %516 = vmatprep.subr.mxu0 0.0
        %517 = vmatpush1.msra.mxu0 0.0
        %518 = vmatprep.subr.mxu0 0.0
        %519 = vmatpush1.msra.mxu0 0.0
        %520 = vmatprep.subr.mxu0 0.0
        %521 = vmatpush1.msra.mxu0 0.0
        %522 = vmatprep.subr.mxu0 0.0
        %523 = vmatpush1.msra.mxu0 0.0
        %524 = vmatprep.subr.mxu0 0.0
        %525 = vmatpush1.msra.mxu0 0.0
        %526 = vmatprep.subr.mxu0 0.0
        %527 = vmatpush1.msra.mxu0 0.0
        %528 = vmatprep.subr.mxu0 0.0
        %529 = vmatpush1.msra.mxu0 0.0
        %530 = vmatprep.subr.mxu0 0.0
        %531 = vmatpush1.msra.mxu0 0.0
        %532 = vmatprep.subr.mxu0 0.0
        %533 = vmatpush1.msra.mxu0 0.0
        %534 = vmatprep.subr.mxu0 0.0
        %535 = vmatpush1.msra.mxu0 0.0
        %536 = vmatprep.subr.mxu0 0.0
        %537 = vmatpush1.msra.mxu0 0.0
        %538 = vmatprep.subr.mxu0 0.0
        %539 = vmatpush1.msra.mxu0 0.0
        %540 = vmatprep.subr.mxu0 0.0
        %541 = vmatpush1.msra.mxu0 0.0
        %542 = vmatprep.subr.mxu0 0.0
        %543 = vmatpush1.msra.mxu0 %v513
        %544 = vmatprep.subr.mxu0 0.0
        %545 = vmatpush1.msra.mxu0 %v512
        %546 = vmatprep.subr.mxu0 0.0
        %547 = vmatpush2.msra.mxu0 0.0
        %548 = vmatprep.subr.mxu0 0.0
        %549 = vmatpush2.msra.mxu0 0.0
        %550 = vmatprep.subr.mxu0 0.0
        %551 = vmatpush2.msra.mxu0 0.0
        %552 = vmatprep.subr.mxu0 0.0
        %553 = vmatpush2.msra.mxu0 0.0
        %554 = vmatprep.subr.mxu0 0.0
        %555 = vmatpush2.msra.mxu0 0.0
        %556 = vmatprep.subr.mxu0 0.0
        %557 = vmatpush2.msra.mxu0 0.0
        %558 = vmatprep.subr.mxu0 0.0
        %559 = vmatpush2.msra.mxu0 0.0
        %560 = vmatprep.subr.mxu0 0.0
        %561 = vmatpush2.msra.mxu0 0.0
        %562 = vmatprep.subr.mxu0 0.0
        %563 = vmatpush2.msra.mxu0 0.0
        %564 = vmatprep.subr.mxu0 0.0
        %565 = vmatpush2.msra.mxu0 0.0
        %566 = vmatprep.subr.mxu0 0.0
        %567 = vmatpush2.msra.mxu0 0.0
        %568 = vmatprep.subr.mxu0 0.0
        %569 = vmatpush2.msra.mxu0 0.0
        %570 = vmatprep.subr.mxu0 0.0
        %571 = vmatpush2.msra.mxu0 0.0
        %572 = vmatprep.subr.mxu0 0.0
        %573 = vmatpush2.msra.mxu0 0.0
        %574 = vmatprep.subr.mxu0 0.0
        %575 = vmatpush2.msra.mxu0 0.0
        %576 = vmatprep.subr.mxu0 0.0
        %577 = vmatpush2.msra.mxu0 0.0
        %578 = vmatprep.mubr.f32.mxu0 0.0
        %579 = vmatmul.mubr.f32.gmra.mxu0 %v151
        %v580 = vpop.f32.mrf.mxu0
        %v581 = vadd.f32 0.0, %v580
        %v582 = vpop.f32.mrf.mxu0
        %583 = vmatprep.mubr.f32.mxu0 0.0
        %584 = vmatmul.mubr.f32.gmra.mxu0 %v154
        %v585 = vpop.f32.mrf.mxu0
        %v586 = vadd.f32 0.0, %v585
        %v587 = vpop.f32.mrf.mxu0
        %588 = vdwg.mxu0
        %v589 = vsel %vm137, %v581, 0.0
        %590 = vadd.xlane.f32.xlu0 %v589
        %v591 = vpop.xlane.xlu0 %590
        %v592 = vsel %vm137, %v586, 0.0
        %593 = vadd.xlane.f32.xlu0 %v592
        %v594 = vpop.xlane.xlu0 %593
        %v595 = vadd.f32 %v591, 1e-06
        %v596 = vadd.f32 %v594, 1e-06
        %v597 = vrcp.pop %v595
        %v598 = vrcp.pop %v596
        %v599 = vmul.f32 %v581, %v597
        %v600 = vmul.f32 %v586, %v598
        %601 = vmatprep.subr.mxu0 0.0
        %602 = vmatpush1.msra.mxu0 0.0
        %603 = vmatprep.subr.mxu0 0.0
        %604 = vmatpush1.msra.mxu0 0.0
        %605 = vmatprep.subr.mxu0 0.0
        %606 = vmatpush1.msra.mxu0 0.0
        %607 = vmatprep.subr.mxu0 0.0
        %608 = vmatpush1.msra.mxu0 0.0
        %609 = vmatprep.subr.mxu0 0.0
        %610 = vmatpush1.msra.mxu0 0.0
        %611 = vmatprep.subr.mxu0 0.0
        %612 = vmatpush1.msra.mxu0 0.0
        %613 = vmatprep.subr.mxu0 0.0
        %614 = vmatpush1.msra.mxu0 0.0
        %615 = vmatprep.subr.mxu0 0.0
        %616 = vmatpush1.msra.mxu0 0.0
        %617 = vmatprep.subr.mxu0 0.0
        %618 = vmatpush1.msra.mxu0 0.0
        %619 = vmatprep.subr.mxu0 0.0
        %620 = vmatpush1.msra.mxu0 0.0
        %621 = vmatprep.subr.mxu0 0.0
        %622 = vmatpush1.msra.mxu0 0.0
        %623 = vmatprep.subr.mxu0 0.0
        %624 = vmatpush1.msra.mxu0 0.0
        %625 = vmatprep.subr.mxu0 0.0
        %626 = vmatpush1.msra.mxu0 0.0
        %627 = vmatprep.subr.mxu0 0.0
        %628 = vmatpush1.msra.mxu0 0.0
        %629 = vmatprep.subr.mxu0 0.0
        %630 = vmatpush1.msra.mxu0 %v600
        %631 = vmatprep.subr.mxu0 0.0
        %632 = vmatpush1.msra.mxu0 %v599
        %633 = vmatprep.subr.mxu0 0.0
        %634 = vmatpush2.msra.mxu0 0.0
        %635 = vmatprep.subr.mxu0 0.0
        %636 = vmatpush2.msra.mxu0 0.0
        %637 = vmatprep.subr.mxu0 0.0
        %638 = vmatpush2.msra.mxu0 0.0
        %639 = vmatprep.subr.mxu0 0.0
        %640 = vmatpush2.msra.mxu0 0.0
        %641 = vmatprep.subr.mxu0 0.0
        %642 = vmatpush2.msra.mxu0 0.0
        %643 = vmatprep.subr.mxu0 0.0
        %644 = vmatpush2.msra.mxu0 0.0
        %645 = vmatprep.subr.mxu0 0.0
        %646 = vmatpush2.msra.mxu0 0.0
        %647 = vmatprep.subr.mxu0 0.0
        %648 = vmatpush2.msra.mxu0 0.0
        %649 = vmatprep.subr.mxu0 0.0
        %650 = vmatpush2.msra.mxu0 0.0
        %651 = vmatprep.subr.mxu0 0.0
        %652 = vmatpush2.msra.mxu0 0.0
        %653 = vmatprep.subr.mxu0 0.0
        %654 = vmatpush2.msra.mxu0 0.0
        %655 = vmatprep.subr.mxu0 0.0
        %656 = vmatpush2.msra.mxu0 0.0
        %657 = vmatprep.subr.mxu0 0.0
        %658 = vmatpush2.msra.mxu0 0.0
        %659 = vmatprep.subr.mxu0 0.0
        %660 = vmatpush2.msra.mxu0 0.0
        %661 = vmatprep.subr.mxu0 0.0
        %662 = vmatpush2.msra.mxu0 0.0
        %663 = vmatprep.subr.mxu0 0.0
        %664 = vmatpush2.msra.mxu0 0.0
        %665 = vmatprep.mubr.f32.mxu0 0.0
        %666 = vmatmul.mubr.f32.gmra.mxu0 %v151
        %v667 = vpop.f32.mrf.mxu0
        %v668 = vadd.f32 0.0, %v667
        %v669 = vpop.f32.mrf.mxu0
        %670 = vmatprep.mubr.f32.mxu0 0.0
        %671 = vmatmul.mubr.f32.gmra.mxu0 %v154
        %v672 = vpop.f32.mrf.mxu0
        %v673 = vadd.f32 0.0, %v672
        %v674 = vpop.f32.mrf.mxu0
        %675 = vdwg.mxu0
        %v676 = vmul.f32 %v668, %v668
        %v677 = vmul.f32 %v673, %v673
        %v678 = vmul.f32 %v676, %v668
        %v679 = vmul.f32 %v677, %v673
        %v680 = vmul.f32 %v678, %v668
        %v681 = vmul.f32 %v679, %v673
        %v682 = vmul.f32 %v680, %v668
        %v683 = vmul.f32 %v681, %v673
        %v684 = vmul.f32 %v682, %v668
        %v685 = vmul.f32 %v683, %v673
        %v686 = vsel %vm137, %v684, 0.0
        %687 = vadd.xlane.f32.xlu0 %v686
        %v688 = vpop.xlane.xlu0 %687
        %v689 = vsel %vm137, %v685, 0.0
        %690 = vadd.xlane.f32.xlu0 %v689
        %v691 = vpop.xlane.xlu0 %690
        %v692 = vadd.f32 %v688, 1e-06
        %v693 = vadd.f32 %v691, 1e-06
        %v694 = vrcp.pop %v692
        %v695 = vrcp.pop %v693
        %v696 = vmul.f32 %v684, %v694
        %v697 = vmul.f32 %v685, %v695
        %698 = vst.msk [vmem:[%s134] sm:$0xff] %vm137, %v696
        %699 = vst.msk [vmem:[%s134 + $0x8] sm:$0xff] %vm137, %v697
        %s700 = sand.u32 %s52, 1
        %s701 = scalar_lea.sflag [#allocation4], %s700
        %s702 = sand.u32 %s52, 1
        %s703 = smul.addr %s702, 16
        %s704 = scalar_lea.vmem [#allocation5], %s703
        // Predicated region
        $region29: #{tpu_custom_call.1} parent=23 // pred_check
          %p705 = pneg %p62
        $region30: #{tpu_custom_call.1} parent=23 // pred_check_branch
          %707 = sbr.rel (%p705) target = $region32
        $region31: #{tpu_custom_call.1} parent=23 // pred_region
          %s709 = ssub.s32 256, 256
          %710 = vsyncadd %s701, %s709
          %s711 = smul.addr %s18, 2
          %s712 = smul.addr %s711, 128
          %s713 = scalar_lea.hbm %s1, %s712
          %s714 = sshll.u32 %s704, 4
          %s715 = int_to_ptr.vmem [resolvable:$true] %s714
          %720 = dma.vmem_to_hbm [thread:$0]  %s715, 256, %s713, %s701, 128, 128, 8
        $region32: #{tpu_custom_call.1} parent=23 // pred_fallthru
          _
      $region24: #{tpu_custom_call.1} parent=5 // pred_fallthru
        _
      %p721 = scmp.le.s32.totalorder 2, %s13
      // Predicated region
      $region33: #{tpu_custom_call.1} parent=5 // pred_check
        %p722 = pneg %p721
      $region34: #{tpu_custom_call.1} parent=5 // pred_check_branch
        %724 = sbr.rel (%p722) target = $region36
      $region35: #{tpu_custom_call.1} parent=5 // pred_region
        %s725 = ssub.s32 %s13, 2
        // Predicated region
        $region37: #{tpu_custom_call.1} parent=35 // pred_check
          %p726 = pneg %p68
        $region38: #{tpu_custom_call.1} parent=35 // pred_check_branch
          %728 = sbr.rel (%p726) target = $region40
        $region39: #{tpu_custom_call.1} parent=35 // pred_region
          %s729 = sand.u32 %s53, 1
          %s730 = scalar_lea.sflag [#allocation4], %s729
          %s731 = sand.u32 %s53, 1
          %s732 = smul.addr %s731, 16
          %s733 = scalar_lea.vmem [#allocation5], %s732
          %734 = dma.done %s730, 256
        $region40: #{tpu_custom_call.1} parent=35 // pred_fallthru
          _
      $region36: #{tpu_custom_call.1} parent=5 // pred_fallthru
        _
    $region6: #{tpu_custom_call.1} parent=1 // loop_footer
      %s17 = sadd.s32 1, %s13
    $region7: #{tpu_custom_call.1} parent=1 // loop_footer_branch
      %12 = sbr.rel target = $region3
    $region8: #{tpu_custom_call.1} parent=1 // loop_exit
      _
    %735 = vsyncpa [#allocation3], 1
    %s736 = scalar_lea.sflag [#allocation3], 1
    %737 = vsyncpa %s736, 1
    %738 = vsyncpa [#allocation4], 1
    %s739 = scalar_lea.sflag [#allocation4], 1
    %740 = vsyncpa %s739, 1

</llo_original>
